<compile_context>
chip_gen: v7x
topology: tpu7x:2x2x1
jax: 0.10.0
libtpu: 0.0.40
codegen_flags: <defaults>
</compile_context>

<pallas_src>
import jax
import jax.numpy as jnp
from jax.experimental import pallas as pl
from jax.experimental.pallas import tpu as pltpu


def _round_up(x, m):
    return ((x + m - 1) // m) * m


def _rgb_to_yuv_kernel(x_ref, o_ref):
    # Block view: (1, 3, tS, L).  Per-channel plane loads -> 2-D (tS, L) values.
    r = x_ref[0, 0].astype(jnp.float32)
    g = x_ref[0, 1].astype(jnp.float32)
    b = x_ref[0, 2].astype(jnp.float32)

    y = 0.299 * r + 0.587 * g + 0.114 * b
    u = -0.147 * r - 0.289 * g + 0.436 * b
    v = 0.615 * r - 0.515 * g - 0.1 * b

    o_ref[0, 0] = y.astype(o_ref.dtype)
    o_ref[0, 1] = u.astype(o_ref.dtype)
    o_ref[0, 2] = v.astype(o_ref.dtype)


def rgb_to_yuv(x, *, lane_width=512, max_rows=256):
    """x: (N, 3, H, W) -> (N, 3, H, W), same dtype. Matches PyTorch RGBToYUV."""
    N, C, H, W = x.shape
    assert C == 3, "RGBToYUV expects 3 channels in dim -3"

    P = H * W
    xf = x.reshape(N, 3, P)  # free reshape: lane-dense flattened spatial plane

    # Lane dim: large multiple of 128 (capped), so stores are unmasked vst.
    if P <= lane_width:
        L = _round_up(P, 128)
    else:
        L = lane_width

    # Sublane (row) dim: full rows if small, otherwise tiles of max_rows (x8).
    S = -(-P // L)
    if S > max_rows:
        tS = max_rows                  # multiple of 8
        S = _round_up(S, tS)
    else:
        tS = S                         # block dim == full array dim -> allowed

    # Pad the flattened plane once (only when H*W is not already tile-aligned).
    P_total = S * L
    if P_total != P:
        xf = jnp.pad(xf, ((0, 0), (0, 0), (0, P_total - P)))
    xf = xf.reshape(N, 3, S, L)

    spec = pl.BlockSpec((1, 3, tS, L), lambda n, s: (n, 0, s, 0))
    out = pl.pallas_call(
        _rgb_to_yuv_kernel,
        out_shape=jax.ShapeDtypeStruct((N, 3, S, L), x.dtype),
        grid=(N, S // tS),
        in_specs=[spec],
        out_specs=spec,
        compiler_params=pltpu.CompilerParams(
            dimension_semantics=("parallel", "parallel"),
            vmem_limit_bytes=32 * 1024 * 1024,
        ),
    )(xf)

    out = out.reshape(N, 3, P_total)
    if P_total != P:
        out = out[:, :, :P]
    return out.reshape(N, 3, H, W)


def _reference(x):
    r, g, b = x[:, 0:1], x[:, 1:2], x[:, 2:3]
    y = 0.299 * r + 0.587 * g + 0.114 * b
    u = -0.147 * r - 0.289 * g + 0.436 * b
    v = 0.615 * r - 0.515 * g - 0.1 * b
    return jnp.concatenate([y, u, v], axis=1)


if __name__ == "__main__":
    key = jax.random.PRNGKey(0)

    # Primary case: (2, 3, 16, 16) -> H*W = 256 (already 128-aligned).
    x = jax.random.uniform(key, (2, 3, 16, 16), dtype=jnp.float32)
    out = jax.block_until_ready(rgb_to_yuv(x))
    ref = _reference(x)
    assert out.shape == (2, 3, 16, 16)
    assert jnp.allclose(out, ref, atol=1e-6, rtol=1e-6)

    # Ragged case: (2, 3, 20, 20) -> H*W = 400 exercises the pad/slice path.
    x2 = jax.random.uniform(jax.random.PRNGKey(0), (2, 3, 20, 20), dtype=jnp.float32)
    out2 = jax.block_until_ready(rgb_to_yuv(x2))
    ref2 = _reference(x2)
    assert out2.shape == (2, 3, 20, 20)
    assert jnp.allclose(out2, ref2, atol=1e-6, rtol=1e-6)

    print("KERNEL_OK")
</pallas_src>

<mosaic_0001>
module attributes {stable_mosaic.version = 11 : i64} {
  func.func @_rgb_to_yuv_kernel(%arg0: i32, %arg1: i32, %arg2: memref<1x3x1x256xf32, #tpu.memory_space<vmem>>, %arg3: memref<1x3x1x256xf32, #tpu.memory_space<vmem>>) attributes {dimension_semantics = [#tpu.dimension_semantics<parallel>, #tpu.dimension_semantics<parallel>], iteration_bounds = array<i64: 2, 1>, scalar_prefetch = 0 : i64, scratch_operands = 0 : i64, tpu.core_type = #tpu.core_type<tc>, window_params = [{transform_indices = @transform_0, window_bounds = array<i64: 1, 3, 1, 256>}, {transform_indices = @transform_1, window_bounds = array<i64: 1, 3, 1, 256>}]} {
    %c0 = arith.constant 0 : index
    %c0_0 = arith.constant 0 : index
    %c0_1 = arith.constant 0 : index
    %c0_2 = arith.constant 0 : index
    %0 = vector.load %arg2[%c0, %c0_0, %c0_1, %c0_2] : memref<1x3x1x256xf32, #tpu.memory_space<vmem>>, vector<1x1x1x256xf32>
    %1 = vector.shape_cast %0 : vector<1x1x1x256xf32> to vector<1x256xf32>
    %c0_3 = arith.constant 0 : index
    %c1 = arith.constant 1 : index
    %c0_4 = arith.constant 0 : index
    %c0_5 = arith.constant 0 : index
    %2 = vector.load %arg2[%c0_3, %c1, %c0_4, %c0_5] : memref<1x3x1x256xf32, #tpu.memory_space<vmem>>, vector<1x1x1x256xf32>
    %3 = vector.shape_cast %2 : vector<1x1x1x256xf32> to vector<1x256xf32>
    %c0_6 = arith.constant 0 : index
    %c2 = arith.constant 2 : index
    %c0_7 = arith.constant 0 : index
    %c0_8 = arith.constant 0 : index
    %4 = vector.load %arg2[%c0_6, %c2, %c0_7, %c0_8] : memref<1x3x1x256xf32, #tpu.memory_space<vmem>>, vector<1x1x1x256xf32>
    %5 = vector.shape_cast %4 : vector<1x1x1x256xf32> to vector<1x256xf32>
    %cst = arith.constant 2.990000e-01 : f32
    %6 = vector.broadcast %cst : f32 to vector<1x256xf32>
    %7 = arith.mulf %6, %1 : vector<1x256xf32>
    %cst_9 = arith.constant 5.870000e-01 : f32
    %8 = vector.broadcast %cst_9 : f32 to vector<1x256xf32>
    %9 = arith.mulf %8, %3 : vector<1x256xf32>
    %10 = arith.addf %7, %9 : vector<1x256xf32>
    %cst_10 = arith.constant 1.140000e-01 : f32
    %11 = vector.broadcast %cst_10 : f32 to vector<1x256xf32>
    %12 = arith.mulf %11, %5 : vector<1x256xf32>
    %13 = arith.addf %10, %12 : vector<1x256xf32>
    %cst_11 = arith.constant -1.470000e-01 : f32
    %14 = vector.broadcast %cst_11 : f32 to vector<1x256xf32>
    %15 = arith.mulf %14, %1 : vector<1x256xf32>
    %cst_12 = arith.constant 2.890000e-01 : f32
    %16 = vector.broadcast %cst_12 : f32 to vector<1x256xf32>
    %17 = arith.mulf %16, %3 : vector<1x256xf32>
    %18 = arith.subf %15, %17 : vector<1x256xf32>
    %cst_13 = arith.constant 4.360000e-01 : f32
    %19 = vector.broadcast %cst_13 : f32 to vector<1x256xf32>
    %20 = arith.mulf %19, %5 : vector<1x256xf32>
    %21 = arith.addf %18, %20 : vector<1x256xf32>
    %cst_14 = arith.constant 6.150000e-01 : f32
    %22 = vector.broadcast %cst_14 : f32 to vector<1x256xf32>
    %23 = arith.mulf %22, %1 : vector<1x256xf32>
    %cst_15 = arith.constant 5.150000e-01 : f32
    %24 = vector.broadcast %cst_15 : f32 to vector<1x256xf32>
    %25 = arith.mulf %24, %3 : vector<1x256xf32>
    %26 = arith.subf %23, %25 : vector<1x256xf32>
    %cst_16 = arith.constant 1.000000e-01 : f32
    %27 = vector.broadcast %cst_16 : f32 to vector<1x256xf32>
    %28 = arith.mulf %27, %5 : vector<1x256xf32>
    %29 = arith.subf %26, %28 : vector<1x256xf32>
    %c0_17 = arith.constant 0 : index
    %c0_18 = arith.constant 0 : index
    %c0_19 = arith.constant 0 : index
    %c0_20 = arith.constant 0 : index
    %30 = vector.load %arg3[%c0_17, %c0_18, %c0_19, %c0_20] : memref<1x3x1x256xf32, #tpu.memory_space<vmem>>, vector<1x1x1x256xf32>
    %31 = vector.shape_cast %30 : vector<1x1x1x256xf32> to vector<1x256xf32>
    %32 = vector.shape_cast %13 : vector<1x256xf32> to vector<1x1x1x256xf32>
    tpu.vector_store %arg3[%c0_17, %c0_18, %c0_19, %c0_20], %32 {strides = array<i32>} : memref<1x3x1x256xf32, #tpu.memory_space<vmem>>, vector<1x1x1x256xf32>,
    %c0_21 = arith.constant 0 : index
    %c1_22 = arith.constant 1 : index
    %c0_23 = arith.constant 0 : index
    %c0_24 = arith.constant 0 : index
    %33 = vector.load %arg3[%c0_21, %c1_22, %c0_23, %c0_24] : memref<1x3x1x256xf32, #tpu.memory_space<vmem>>, vector<1x1x1x256xf32>
    %34 = vector.shape_cast %33 : vector<1x1x1x256xf32> to vector<1x256xf32>
    %35 = vector.shape_cast %21 : vector<1x256xf32> to vector<1x1x1x256xf32>
    tpu.vector_store %arg3[%c0_21, %c1_22, %c0_23, %c0_24], %35 {strides = array<i32>} : memref<1x3x1x256xf32, #tpu.memory_space<vmem>>, vector<1x1x1x256xf32>,
    %c0_25 = arith.constant 0 : index
    %c2_26 = arith.constant 2 : index
    %c0_27 = arith.constant 0 : index
    %c0_28 = arith.constant 0 : index
    %36 = vector.load %arg3[%c0_25, %c2_26, %c0_27, %c0_28] : memref<1x3x1x256xf32, #tpu.memory_space<vmem>>, vector<1x1x1x256xf32>
    %37 = vector.shape_cast %36 : vector<1x1x1x256xf32> to vector<1x256xf32>
    %38 = vector.shape_cast %29 : vector<1x256xf32> to vector<1x1x1x256xf32>
    tpu.vector_store %arg3[%c0_25, %c2_26, %c0_27, %c0_28], %38 {strides = array<i32>} : memref<1x3x1x256xf32, #tpu.memory_space<vmem>>, vector<1x1x1x256xf32>,
    return
  }
  func.func @transform_0(%arg0: i32, %arg1: i32) -> (i32, i32, i32, i32) {
    %c0_i32 = arith.constant 0 : i32
    %c0_i32_0 = arith.constant 0 : i32
    %c0_i32_1 = arith.constant 0 : i32
    return %arg0, %c0_i32, %arg1, %c0_i32_0 : i32, i32, i32, i32
  }
  func.func @transform_1(%arg0: i32, %arg1: i32) -> (i32, i32, i32, i32) {
    %c0_i32 = arith.constant 0 : i32
    %c0_i32_0 = arith.constant 0 : i32
    %c0_i32_1 = arith.constant 0 : i32
    return %arg0, %c0_i32, %arg1, %c0_i32_0 : i32, i32, i32, i32
  }
}

</mosaic_0001>

<llo_original>
// kernel: tpu_custom_call.1
$region0: #{tpu_custom_call.1}
  #allocation0 [shape = 'u32[]', space=smem, size = 0x4, offset = 0x4, fixed_abs, tag = 'smem constant byte address 0x4 - core index']
  #allocation1 [shape = 'u32[144,128]{1,0:T(1,128)}', space=vmem, size = 0x12000, scoped, tag = 'internal scratch']
  %s0 = inlined_call_operand.hbm [shape: f32[2,3,1,256], index: 0, kind: input, shape index: {}]
  %s1 = inlined_call_operand.hbm [shape: f32[2,3,1,256], index: 1, kind: output, shape index: {}]
  %s2 = sld [smem:[#allocation0]]
  $region41: #{tpu_custom_call.1} parent=0
    _
  %s4 = ssub.s32 1, %s2
  %s5 = scalar_select 0, %s4, %s2
  $region1: #{tpu_custom_call.1} parent=0
    #allocation2 [shape = 'u8[6144]{0}', space=vmem, size = 0x1800, scoped, tag = 'input window, operand 0']
    #allocation3 [shape = 's32[2]{0}', space=sflag, size = 0x8, scoped, tag = 'scoped memory for tpu_custom_call.1']
    #allocation4 [shape = 's32[2]{0}', space=sflag, size = 0x8, scoped, tag = 'scoped memory for tpu_custom_call.1']
    #allocation5 [shape = 'u8[6144]{0}', space=vmem, size = 0x1800, scoped, tag = 'output window, operand 0']
    %6 = vsyncpa [#allocation3], 0
    %s7 = scalar_lea.sflag [#allocation3], 1
    %8 = vsyncpa %s7, 0
    %9 = vsyncpa [#allocation4], 0
    %s10 = scalar_lea.sflag [#allocation4], 1
    %11 = vsyncpa %s10, 0
    loop: start=0, step=1, limit=4
    $region2: #{tpu_custom_call.1} parent=1 // loop_pre_header
      _
    $region3: #{tpu_custom_call.1} parent=1 // loop_header
      %s13 = sphi 0, %s17
      %p14 = scmp.ge.s32.totalorder %s13, 4
      %s20 = sphi 0, %s32
      %s21 = sphi 0, %s28
      %s22 = sphi 0, %s20
      %s23 = sphi 0, %s21
      %s24 = sphi 0, %s22
      %s25 = sphi 0, %s23
      %s37 = sphi 0, %s39
      %s40 = sphi 0, %s37
      %s41 = sphi 0, %s40
      %s57 = sphi 0, %s41
      %s65 = sphi 0, %s67
      %s68 = sphi 0, %s65
      %s69 = sphi 0, %s68
      %s85 = sphi 0, %s69
    $region4: #{tpu_custom_call.1} parent=1 // loop_header_branch
      %16 = sbr.rel (%p14) target = $region8
    $region5: #{tpu_custom_call.1} parent=1 // loop_body
      %s18 = ssub.s32 %s13, 1
      %s19 = ssub.s32 %s13, 2
      %s26 = sadd.s32 1, %s21
      %p27 = scmp.ge.s32.totalorder %s26, 1
      %s28 = scalar_select %p27, 0, %s26
      %s29 = sadd.s32 1, %s20
      %s30 = scalar_select %p27, %s29, %s20
      %p31 = scmp.ge.s32.totalorder %s30, 2
      %s32 = scalar_select %p31, 0, %s30
      %s33 = ssub.s32 %s20, %s32
      %s34 = ssub.s32 %s21, %s28
      %s35 = sor.u32 %s33, %s34
      %p36 = scmp.eq.s32.totalorder %s35, 0
      %s38 = sadd.s32 %s37, 1
      %s39 = scalar_select %p36, %s37, %s38
      %p42 = pneg %p36
      %p43 = scmp.eq.s32.totalorder %s13, 1
      %p44 = por %p42, %p43
      %p45 = scmp.ne.s32.totalorder %s37, %s40
      %p46 = scmp.eq.s32.totalorder %s13, 0
      %p47 = por %p45, %p46
      %p48 = scmp.ne.s32.totalorder %s37, %s40
      %p49 = scmp.eq.s32.totalorder %s18, 1
      %p50 = por %p48, %p49
      %p51 = scmp.ne.s32.totalorder %s40, %s41
      %p52 = scmp.eq.s32.totalorder %s18, 0
      %p53 = por %p51, %p52
      %p54 = scmp.ne.s32.totalorder %s40, %s41
      %p55 = scmp.eq.s32.totalorder %s19, 1
      %p56 = por %p54, %p55
      %p58 = scmp.ne.s32.totalorder %s41, %s57
      %p59 = scmp.eq.s32.totalorder %s19, 0
      %p60 = por %p58, %p59
      %s61 = ssub.s32 %s20, %s32
      %s62 = ssub.s32 %s21, %s28
      %s63 = sor.u32 %s61, %s62
      %p64 = scmp.eq.s32.totalorder %s63, 0
      %s66 = sadd.s32 %s65, 1
      %s67 = scalar_select %p64, %s65, %s66
      %p70 = pneg %p64
      %p71 = scmp.eq.s32.totalorder %s13, 1
      %p72 = por %p70, %p71
      %p73 = scmp.ne.s32.totalorder %s65, %s68
      %p74 = scmp.eq.s32.totalorder %s13, 0
      %p75 = por %p73, %p74
      %p76 = scmp.ne.s32.totalorder %s65, %s68
      %p77 = scmp.eq.s32.totalorder %s18, 1
      %p78 = por %p76, %p77
      %p79 = scmp.ne.s32.totalorder %s68, %s69
      %p80 = scmp.eq.s32.totalorder %s18, 0
      %p81 = por %p79, %p80
      %p82 = scmp.ne.s32.totalorder %s68, %s69
      %p83 = scmp.eq.s32.totalorder %s19, 1
      %p84 = por %p82, %p83
      %p86 = scmp.ne.s32.totalorder %s69, %s85
      %p87 = scmp.eq.s32.totalorder %s19, 0
      %p88 = por %p86, %p87
      %p89 = scmp.le.s32.totalorder 1, %s13
      %p90 = scmp.lt.s32.totalorder %s13, 3
      %p91 = pnand %p89, %p90
      %p92 = pneg %p91
      // Predicated region
      $region9: #{tpu_custom_call.1} parent=5 // pred_check
        _
      $region10: #{tpu_custom_call.1} parent=5 // pred_check_branch
        %94 = sbr.rel (%p91) target = $region12
      $region11: #{tpu_custom_call.1} parent=5 // pred_region
        %s95 = ssub.s32 %s13, 1
      $region12: #{tpu_custom_call.1} parent=5 // pred_fallthru
        _
      %p96 = scmp.lt.s32.totalorder %s13, 2
      // Predicated region
      $region13: #{tpu_custom_call.1} parent=5 // pred_check
        %p97 = pneg %p96
      $region14: #{tpu_custom_call.1} parent=5 // pred_check_branch
        %99 = sbr.rel (%p97) target = $region16
      $region15: #{tpu_custom_call.1} parent=5 // pred_region
        // Predicated region
        $region17: #{tpu_custom_call.1} parent=15 // pred_check
          %p100 = pneg %p47
        $region18: #{tpu_custom_call.1} parent=15 // pred_check_branch
          %102 = sbr.rel (%p100) target = $region20
        $region19: #{tpu_custom_call.1} parent=15 // pred_region
          %s103 = sand.u32 %s37, 1
          %s104 = scalar_lea.sflag [#allocation3], %s103
          %s105 = sand.u32 %s37, 1
          %s106 = smul.addr %s105, 6
          %s107 = scalar_lea.vmem [#allocation2], %s106
          %s109 = ssub.s32 96, 96
          %110 = vsyncadd %s104, %s109
          %s111 = smul.addr %s21, 2
          %s112 = smul.addr %s20, 6
          %s113 = sadd.s32 %s111, %s112
          %s114 = smul.addr %s113, 16
          %s115 = scalar_lea.hbm %s0, %s114
          %s116 = sshll.u32 %s107, 4
          %s117 = int_to_ptr.vmem [resolvable:$true] %s116
          %122 = dma.hbm_to_vmem [thread:$0]  %s115, 96, %s117, %s104, 32, 32, 2
        $region20: #{tpu_custom_call.1} parent=15 // pred_fallthru
          _
      $region16: #{tpu_custom_call.1} parent=5 // pred_fallthru
        _
      %p123 = scmp.le.s32.totalorder 1, %s13
      %p124 = scmp.lt.s32.totalorder %s13, 3
      %p125 = pnand %p123, %p124
      %p126 = pneg %p125
      // Predicated region
      $region21: #{tpu_custom_call.1} parent=5 // pred_check
        _
      $region22: #{tpu_custom_call.1} parent=5 // pred_check_branch
        %128 = sbr.rel (%p125) target = $region24
      $region23: #{tpu_custom_call.1} parent=5 // pred_region
        %s129 = ssub.s32 %s13, 1
        %s130 = sand.u32 %s40, 1
        %s131 = scalar_lea.sflag [#allocation3], %s130
        %s132 = sand.u32 %s40, 1
        %s133 = smul.addr %s132, 6
        %s134 = scalar_lea.vmem [#allocation2], %s133
        // Predicated region
        $region25: #{tpu_custom_call.1} parent=23 // pred_check
          %p135 = pneg %p53
        $region26: #{tpu_custom_call.1} parent=23 // pred_check_branch
          %137 = sbr.rel (%p135) target = $region28
        $region27: #{tpu_custom_call.1} parent=23 // pred_region
          %138 = dma.done %s131, 96
        $region28: #{tpu_custom_call.1} parent=23 // pred_fallthru
          _
        %s139 = sand.u32 %s40, 1
        %s140 = scalar_lea.sflag [#allocation3], %s139
        %s141 = sand.u32 %s40, 1
        %s142 = smul.addr %s141, 6
        %s143 = scalar_lea.vmem [#allocation2], %s142
        %p144 = pneg %p53
        %p145 = pneg %p50
        %p146 = pneg %p81
        %p147 = pneg %p78
        %s148 = sand.u32 %s68, 1
        %s149 = scalar_lea.sflag [#allocation4], %s148
        %s150 = sand.u32 %s68, 1
        %s151 = smul.addr %s150, 6
        %s152 = scalar_lea.vmem [#allocation5], %s151
        %v153 = vld [vmem:[%s134] sm:$0x3]
        %s154 = scalar_lea.vmem %s134, 2 [#allocation2]
        %v155 = vld [vmem:[%s154] sm:$0x3]
        %s156 = scalar_lea.vmem %s134, 4 [#allocation2]
        %v157 = vld [vmem:[%s156] sm:$0x3]
        %v158 = vmul.f32 %v153, 0.299
        %v159 = vmul.f32 %v155, 0.587
        %v160 = vadd.f32 %v158, %v159
        %v161 = vmul.f32 %v157, 0.114
        %v162 = vadd.f32 %v160, %v161
        %v163 = vmul.f32 %v153, -0.147
        %v164 = vmul.f32 %v155, 0.289
        %v165 = vsub.f32 %v163, %v164
        %v166 = vmul.f32 %v157, 0.436
        %v167 = vadd.f32 %v165, %v166
        %v168 = vmul.f32 %v153, 0.615
        %v169 = vmul.f32 %v155, 0.515
        %v170 = vsub.f32 %v168, %v169
        %v171 = vmul.f32 %v157, 0.1
        %v172 = vsub.f32 %v170, %v171
        %v173 = vlaneseq
        %vm174 = vcmp.ge.s32.totalorder %v173, 0
        %vm175 = vcmp.lt.s32.totalorder %v173, 256
        %vm176 = vmand %vm174, %vm175
        %177 = vst.msk [vmem:[%s152] sm:$0x3] %vm176, %v162
        %s178 = scalar_lea.vmem %s152, 2 [#allocation5]
        %179 = vst.msk [vmem:[%s178] sm:$0x3] %vm176, %v167
        %s180 = scalar_lea.vmem %s152, 4 [#allocation5]
        %181 = vst.msk [vmem:[%s180] sm:$0x3] %vm176, %v172
        %s182 = sand.u32 %s68, 1
        %s183 = scalar_lea.sflag [#allocation4], %s182
        %s184 = sand.u32 %s68, 1
        %s185 = smul.addr %s184, 6
        %s186 = scalar_lea.vmem [#allocation5], %s185
        // Predicated region
        $region29: #{tpu_custom_call.1} parent=23 // pred_check
          %p187 = pneg %p78
        $region30: #{tpu_custom_call.1} parent=23 // pred_check_branch
          %189 = sbr.rel (%p187) target = $region32
        $region31: #{tpu_custom_call.1} parent=23 // pred_region
          %s191 = ssub.s32 96, 96
          %192 = vsyncadd %s183, %s191
          %s193 = smul.addr %s23, 2
          %s194 = smul.addr %s22, 6
          %s195 = sadd.s32 %s193, %s194
          %s196 = smul.addr %s195, 16
          %s197 = scalar_lea.hbm %s1, %s196
          %s198 = sshll.u32 %s186, 4
          %s199 = int_to_ptr.vmem [resolvable:$true] %s198
          %204 = dma.vmem_to_hbm [thread:$0]  %s199, 96, %s197, %s183, 32, 32, 2
        $region32: #{tpu_custom_call.1} parent=23 // pred_fallthru
          _
      $region24: #{tpu_custom_call.1} parent=5 // pred_fallthru
        _
      %p205 = scmp.le.s32.totalorder 2, %s13
      // Predicated region
      $region33: #{tpu_custom_call.1} parent=5 // pred_check
        %p206 = pneg %p205
      $region34: #{tpu_custom_call.1} parent=5 // pred_check_branch
        %208 = sbr.rel (%p206) target = $region36
      $region35: #{tpu_custom_call.1} parent=5 // pred_region
        %s209 = ssub.s32 %s13, 2
        // Predicated region
        $region37: #{tpu_custom_call.1} parent=35 // pred_check
          %p210 = pneg %p84
        $region38: #{tpu_custom_call.1} parent=35 // pred_check_branch
          %212 = sbr.rel (%p210) target = $region40
        $region39: #{tpu_custom_call.1} parent=35 // pred_region
          %s213 = sand.u32 %s69, 1
          %s214 = scalar_lea.sflag [#allocation4], %s213
          %s215 = sand.u32 %s69, 1
          %s216 = smul.addr %s215, 6
          %s217 = scalar_lea.vmem [#allocation5], %s216
          %218 = dma.done %s214, 96
        $region40: #{tpu_custom_call.1} parent=35 // pred_fallthru
          _
      $region36: #{tpu_custom_call.1} parent=5 // pred_fallthru
        _
    $region6: #{tpu_custom_call.1} parent=1 // loop_footer
      %s17 = sadd.s32 1, %s13
    $region7: #{tpu_custom_call.1} parent=1 // loop_footer_branch
      %12 = sbr.rel target = $region3
    $region8: #{tpu_custom_call.1} parent=1 // loop_exit
      _
    %219 = vsyncpa [#allocation3], 1
    %s220 = scalar_lea.sflag [#allocation3], 1
    %221 = vsyncpa %s220, 1
    %222 = vsyncpa [#allocation4], 1
    %s223 = scalar_lea.sflag [#allocation4], 1
    %224 = vsyncpa %s223, 1

</llo_original>
